<compile_context>
chip_gen: v7x
topology: tpu7x:2x2x1
jax: 0.10.0
libtpu: 0.0.40
codegen_flags: <defaults>
</compile_context>

<pallas_src>
import jax
import jax.numpy as jnp
from jax.experimental import pallas as pl
from jax.experimental.pallas import tpu as pltpu


def _make_gated_attention_kernel(N, N_pad, D, K):
    def kernel(xt_ref, wvu_ref, bvu_ref, ww_ref, bw_ref, out_ref):
        # xt_ref : (1, L, N_pad)  per-bag instances-on-lanes block
        # wvu_ref: (2D, L)        fused [Wv; Wu]
        # bvu_ref: (2D, 1)        fused [bv; bu]
        # ww_ref : (D, K)         final projection, pre-transposed
        # bw_ref : (K, 1)
        # out_ref: (1, K, N_pad)
        xt = xt_ref[0]                                               # (L, N_pad)

        # Fused V/U projection: one MXU matmul, f32 accumulation.
        h = jnp.dot(wvu_ref[...], xt,
                    preferred_element_type=jnp.float32) + bvu_ref[...]  # (2D, N_pad)
        av = jnp.tanh(h[:D, :])                                      # (D, N_pad)
        au = jax.nn.sigmoid(h[D:, :])                                # (D, N_pad)
        gated = av * au                                              # (D, N_pad) f32

        ww = ww_ref[...].astype(jnp.float32)                         # (D, K)
        if K == 1:
            # Matrix-vector product: VPU multiply + sublane reduce (skip MXU).
            a = jnp.sum(gated * ww, axis=0, keepdims=True) + bw_ref[...]  # (1, N_pad)
        else:
            a = jax.lax.dot_general(
                ww, gated, (((0,), (0,)), ((), ())),
                preferred_element_type=jnp.float32) + bw_ref[...]         # (K, N_pad)

        # Mask padded instance columns so they vanish from the softmax.
        if N_pad != N:
            col = jax.lax.broadcasted_iota(jnp.int32, (K, N_pad), 1)
            a = jnp.where(col < N, a, jnp.float32(-1e30))

        # Softmax over the (lane-mapped) instance axis.
        a_max = jnp.max(a, axis=-1, keepdims=True)
        e = jnp.exp(a - a_max)
        denom = jnp.sum(e, axis=-1, keepdims=True)
        out_ref[0] = (e * pl.reciprocal(denom, approx=True)).astype(out_ref.dtype)

    return kernel


def attention_gated(x, wv, bv, wu, bu, ww, bw, *, compute_dtype=jnp.float32):
    """Gated attention pooling (batched).

    x : (B, N, L) or (N, L) instances.
    wv, wu : (D, L) torch-layout Linear weights; bv, bu : (D,)
    ww : (K, D); bw : (K,)
    Returns softmax-normalized attention of shape (B, K, N) (or (K, N)).
    """
    squeeze = x.ndim == 2
    if squeeze:
        x = x[None]
    B, N, L = x.shape
    D = wv.shape[0]
    K = ww.shape[0]

    # Lane-dense output width: pad the instance axis to a multiple of 128.
    N_pad = ((N + 127) // 128) * 128

    cd = compute_dtype
    # Layout plumbing in the wrapper (fuses into one XLA copy):
    #   x -> (B, L, N_pad) "instances on lanes", zero padded, compute dtype.
    xt = jnp.swapaxes(x, 1, 2).astype(cd)                        # (B, L, N)
    xt = jnp.pad(xt, ((0, 0), (0, 0), (0, N_pad - N)))           # (B, L, N_pad)
    wvu = jnp.concatenate([wv, wu], axis=0).astype(cd)           # (2D, L)
    bvu = jnp.concatenate([bv, bu]).reshape(2 * D, 1).astype(jnp.float32)
    ww_t = ww.T.astype(jnp.float32)                              # (D, K)
    bw_c = bw.reshape(K, 1).astype(jnp.float32)

    out = pl.pallas_call(
        _make_gated_attention_kernel(N, N_pad, D, K),
        out_shape=jax.ShapeDtypeStruct((B, K, N_pad), jnp.float32),
        grid=(B,),
        in_specs=[
            pl.BlockSpec((1, L, N_pad), lambda b: (b, 0, 0)),    # per-bag x
            pl.BlockSpec((2 * D, L), lambda b: (0, 0)),          # fused weight
            pl.BlockSpec((2 * D, 1), lambda b: (0, 0)),          # fused bias
            pl.BlockSpec((D, K), lambda b: (0, 0)),              # final proj
            pl.BlockSpec((K, 1), lambda b: (0, 0)),              # final bias
        ],
        out_specs=pl.BlockSpec((1, K, N_pad), lambda b: (b, 0, 0)),
        compiler_params=pltpu.CompilerParams(
            dimension_semantics=("parallel",),
        ),
    )(xt, wvu, bvu, ww_t, bw_c)

    out = out[:, :, :N]
    return out[0] if squeeze else out


def _xavier_normal(key, fan_out, fan_in):
    # torch.nn.init.xavier_normal_ on a (out, in) Linear weight.
    std = (2.0 / (fan_in + fan_out)) ** 0.5
    return std * jax.random.normal(key, (fan_out, fan_in), dtype=jnp.float32)


def _reference(x, wv, bv, wu, bu, ww, bw):
    av = jnp.tanh(x @ wv.T + bv)
    au = jax.nn.sigmoid(x @ wu.T + bu)
    logits = (av * au) @ ww.T + bw                 # (B, N, K)
    a = jnp.swapaxes(logits, -1, -2)               # (B, K, N)
    return jax.nn.softmax(a, axis=-1)


if __name__ == "__main__":
    # Small shapes consistent with the module (B bags of N instances each).
    B, N, L, D, K = 4, 8, 32, 16, 1

    root = jax.random.PRNGKey(0)
    kx, kv, ku, kw = jax.random.split(root, 4)

    x = jax.random.normal(kx, (B, N, L), dtype=jnp.float32)

    wv = _xavier_normal(kv, D, L)                  # torch layout (out, in)
    bv = jnp.zeros((D,), jnp.float32)
    wu = _xavier_normal(ku, D, L)
    bu = jnp.zeros((D,), jnp.float32)
    ww = _xavier_normal(kw, K, D)
    bw = jnp.zeros((K,), jnp.float32)

    ref = _reference(x, wv, bv, wu, bu, ww, bw)

    # f32 compute path.
    out = jax.block_until_ready(attention_gated(x, wv, bv, wu, bu, ww, bw))
    assert out.shape == (B, K, N)
    assert jnp.allclose(out, ref, atol=5e-3, rtol=5e-3), \
        float(jnp.max(jnp.abs(out - ref)))

    # bf16 compute path (halved DMA bytes, bf16 MXU, f32 accumulation).
    out_bf16 = jax.block_until_ready(
        attention_gated(x, wv, bv, wu, bu, ww, bw, compute_dtype=jnp.bfloat16))
    assert jnp.allclose(out_bf16, ref, atol=3e-2, rtol=3e-2), \
        float(jnp.max(jnp.abs(out_bf16 - ref)))

    print("KERNEL_OK")
</pallas_src>

<mosaic_0001>
module attributes {stable_mosaic.version = 11 : i64} {
  func.func @kernel(%arg0: i32, %arg1: memref<1x32x128xf32, #tpu.memory_space<vmem>>, %arg2: memref<32x32xf32, #tpu.memory_space<vmem>>, %arg3: memref<32x1xf32, #tpu.memory_space<vmem>>, %arg4: memref<16x1xf32, #tpu.memory_space<vmem>>, %arg5: memref<1x1xf32, #tpu.memory_space<vmem>>, %arg6: memref<1x1x128xf32, #tpu.memory_space<vmem>>) attributes {dimension_semantics = [#tpu.dimension_semantics<parallel>], iteration_bounds = array<i64: 4>, scalar_prefetch = 0 : i64, scratch_operands = 0 : i64, tpu.core_type = #tpu.core_type<tc>, window_params = [{transform_indices = @transform_0, window_bounds = array<i64: 1, 32, 128>}, {pipeline_mode = #tpu.pipeline_mode<synchronous>, transform_indices = @transform_1, window_bounds = array<i64: 32, 32>}, {pipeline_mode = #tpu.pipeline_mode<synchronous>, transform_indices = @transform_2, window_bounds = array<i64: 32, 1>}, {pipeline_mode = #tpu.pipeline_mode<synchronous>, transform_indices = @transform_3, window_bounds = array<i64: 16, 1>}, {pipeline_mode = #tpu.pipeline_mode<synchronous>, transform_indices = @transform_4, window_bounds = array<i64: 1, 1>}, {transform_indices = @transform_5, window_bounds = array<i64: 1, 1, 128>}]} {
    %c0 = arith.constant 0 : index
    %c0_0 = arith.constant 0 : index
    %c0_1 = arith.constant 0 : index
    %0 = vector.load %arg1[%c0, %c0_0, %c0_1] : memref<1x32x128xf32, #tpu.memory_space<vmem>>, vector<1x32x128xf32>
    %1 = vector.shape_cast %0 : vector<1x32x128xf32> to vector<32x128xf32>
    %c0_2 = arith.constant 0 : index
    %c0_3 = arith.constant 0 : index
    %2 = vector.load %arg2[%c0_2, %c0_3] : memref<32x32xf32, #tpu.memory_space<vmem>>, vector<32x32xf32>
    %cst = arith.constant dense<0.000000e+00> : vector<32x128xf32>
    %3 = tpu.matmul %2, %1, %cst {dimension_numbers = #tpu.dot_dimension_numbers<[1], [0], [0], [1], [0, 0, 1, 1], [], []>} : vector<32x32xf32>, vector<32x128xf32>, vector<32x128xf32> -> vector<32x128xf32>
    %c0_4 = arith.constant 0 : index
    %c0_5 = arith.constant 0 : index
    %4 = vector.load %arg3[%c0_4, %c0_5] : memref<32x1xf32, #tpu.memory_space<vmem>>, vector<32x1xf32>
    %5 = vector.broadcast %4 : vector<32x1xf32> to vector<32x128xf32>
    %6 = arith.addf %3, %5 : vector<32x128xf32>
    %7 = vector.extract_strided_slice %6 {offsets = [0, 0], sizes = [16, 128], strides = [1, 1]} : vector<32x128xf32> to vector<16x128xf32>
    %8 = math.tanh %7 : vector<16x128xf32>
    %9 = vector.extract_strided_slice %6 {offsets = [16, 0], sizes = [16, 128], strides = [1, 1]} : vector<32x128xf32> to vector<16x128xf32>
    %10 = arith.negf %9 : vector<16x128xf32>
    %11 = math.exp %10 : vector<16x128xf32>
    %cst_6 = arith.constant 1.000000e+00 : f32
    %12 = vector.broadcast %cst_6 : f32 to vector<16x128xf32>
    %13 = arith.addf %12, %11 : vector<16x128xf32>
    %14 = arith.divf %12, %13 : vector<16x128xf32>
    %15 = arith.mulf %8, %14 : vector<16x128xf32>
    %c0_7 = arith.constant 0 : index
    %c0_8 = arith.constant 0 : index
    %16 = vector.load %arg4[%c0_7, %c0_8] : memref<16x1xf32, #tpu.memory_space<vmem>>, vector<16x1xf32>
    %17 = vector.broadcast %16 : vector<16x1xf32> to vector<16x128xf32>
    %18 = arith.mulf %15, %17 : vector<16x128xf32>
    %cst_9 = arith.constant dense<0.000000e+00> : vector<128xf32>
    %19 = vector.multi_reduction <add>, %18, %cst_9 [0] : vector<16x128xf32> to vector<128xf32>
    %20 = vector.shape_cast %19 : vector<128xf32> to vector<1x128xf32>
    %c0_10 = arith.constant 0 : index
    %c0_11 = arith.constant 0 : index
    %21 = vector.load %arg5[%c0_10, %c0_11] : memref<1x1xf32, #tpu.memory_space<vmem>>, vector<1x1xf32>
    %22 = vector.broadcast %21 : vector<1x1xf32> to vector<1x128xf32>
    %23 = arith.addf %20, %22 : vector<1x128xf32>
    %24 = tpu.iota {dimensions = array<i32: 1>} : vector<1x128xi32>
    %c8_i32 = arith.constant 8 : i32
    %25 = vector.broadcast %c8_i32 : i32 to vector<1x128xi32>
    %26 = arith.cmpi slt, %24, %25 : vector<1x128xi32>
    %cst_12 = arith.constant -1.000000e+30 : f32
    %27 = vector.broadcast %cst_12 : f32 to vector<1x128xf32>
    %28 = arith.select %26, %23, %27 : vector<1x128xi1>, vector<1x128xf32>
    %cst_13 = arith.constant dense<0xFF800000> : vector<1xf32>
    %29 = vector.multi_reduction <maximumf>, %28, %cst_13 [1] : vector<1x128xf32> to vector<1xf32>
    %30 = vector.shape_cast %29 : vector<1xf32> to vector<1x1xf32>
    %31 = vector.broadcast %30 : vector<1x1xf32> to vector<1x128xf32>
    %32 = arith.subf %28, %31 : vector<1x128xf32>
    %33 = math.exp %32 : vector<1x128xf32>
    %cst_14 = arith.constant dense<0.000000e+00> : vector<1xf32>
    %34 = vector.multi_reduction <add>, %33, %cst_14 [1] : vector<1x128xf32> to vector<1xf32>
    %35 = vector.shape_cast %34 : vector<1xf32> to vector<1x1xf32>
    %36 = tpu.reciprocal %35 {approx = true} : vector<1x1xf32> -> vector<1x1xf32>
    %37 = vector.broadcast %36 : vector<1x1xf32> to vector<1x128xf32>
    %38 = arith.mulf %33, %37 : vector<1x128xf32>
    %c0_15 = arith.constant 0 : index
    %c0_16 = arith.constant 0 : index
    %c0_17 = arith.constant 0 : index
    %39 = vector.load %arg6[%c0_15, %c0_16, %c0_17] : memref<1x1x128xf32, #tpu.memory_space<vmem>>, vector<1x1x128xf32>
    %40 = vector.shape_cast %39 : vector<1x1x128xf32> to vector<1x128xf32>
    %41 = vector.shape_cast %38 : vector<1x128xf32> to vector<1x1x128xf32>
    tpu.vector_store %arg6[%c0_15, %c0_16, %c0_17], %41 {strides = array<i32>} : memref<1x1x128xf32, #tpu.memory_space<vmem>>, vector<1x1x128xf32>,
    return
  }
  func.func @transform_0(%arg0: i32) -> (i32, i32, i32) {
    %c0_i32 = arith.constant 0 : i32
    %c0_i32_0 = arith.constant 0 : i32
    %c0_i32_1 = arith.constant 0 : i32
    return %arg0, %c0_i32, %c0_i32_0 : i32, i32, i32
  }
  func.func @transform_1(%arg0: i32) -> (i32, i32) {
    %c0_i32 = arith.constant 0 : i32
    %c0_i32_0 = arith.constant 0 : i32
    %c0_i32_1 = arith.constant 0 : i32
    return %c0_i32, %c0_i32_0 : i32, i32
  }
  func.func @transform_2(%arg0: i32) -> (i32, i32) {
    %c0_i32 = arith.constant 0 : i32
    %c0_i32_0 = arith.constant 0 : i32
    %c0_i32_1 = arith.constant 0 : i32
    return %c0_i32, %c0_i32_0 : i32, i32
  }
  func.func @transform_3(%arg0: i32) -> (i32, i32) {
    %c0_i32 = arith.constant 0 : i32
    %c0_i32_0 = arith.constant 0 : i32
    %c0_i32_1 = arith.constant 0 : i32
    return %c0_i32, %c0_i32_0 : i32, i32
  }
  func.func @transform_4(%arg0: i32) -> (i32, i32) {
    %c0_i32 = arith.constant 0 : i32
    %c0_i32_0 = arith.constant 0 : i32
    %c0_i32_1 = arith.constant 0 : i32
    return %c0_i32, %c0_i32_0 : i32, i32
  }
  func.func @transform_5(%arg0: i32) -> (i32, i32, i32) {
    %c0_i32 = arith.constant 0 : i32
    %c0_i32_0 = arith.constant 0 : i32
    %c0_i32_1 = arith.constant 0 : i32
    return %arg0, %c0_i32, %c0_i32_0 : i32, i32, i32
  }
}

</mosaic_0001>

<llo_original>
// kernel: tpu_custom_call.1
$region0: #{tpu_custom_call.1}
  #allocation0 [shape = 'u32[]', space=smem, size = 0x4, offset = 0x4, fixed_abs, tag = 'smem constant byte address 0x4 - core index']
  #allocation1 [shape = 'u32[144,128]{1,0:T(1,128)}', space=vmem, size = 0x12000, scoped, tag = 'internal scratch']
  #allocation2 [shape = 'f32[1,1]{1,0:T(1,128)S(1)}', space=vmem, size = 0x200, scoped, tag = 'scoped memory for tpu_custom_call.1']
  %s0 = inlined_call_operand.hbm [shape: f32[4,32,128], index: 0, kind: input, shape index: {}]
  %s1 = inlined_call_operand.vmem [shape: f32[32,32], index: 1, kind: input, shape index: {}]
  %s2 = inlined_call_operand.vmem [shape: f32[32,1], index: 2, kind: input, shape index: {}]
  %s3 = inlined_call_operand.vmem [shape: f32[16,1], index: 3, kind: input, shape index: {}]
  %s4 = inlined_call_operand.<no memory space> [shape: f32[1,1], index: 4, kind: input, shape index: {}]
  %s5 = inlined_call_operand.hbm [shape: f32[4,1,128], index: 5, kind: output, shape index: {}]
  %s6 = sld [smem:[#allocation0]]
  $region57: #{tpu_custom_call.1} parent=0
    _
  %s8 = ssub.s32 1, %s6
  %s9 = scalar_select 0, %s8, %s6
  %v10 = vstv %s4
  %11 = vst [vmem:[#allocation2] sm:$0x1] %v10
  $region1: #{tpu_custom_call.1} parent=0
    #allocation3 [shape = 'u8[32768]{0}', space=vmem, size = 0x8000, scoped, tag = 'input window, operand 0']
    #allocation4 [shape = 's32[2]{0}', space=sflag, size = 0x8, scoped, tag = 'scoped memory for tpu_custom_call.1']
    #allocation5 [shape = 's32[2]{0}', space=sflag, size = 0x8, scoped, tag = 'scoped memory for tpu_custom_call.1']
    #allocation6 [shape = 'u8[1024]{0}', space=vmem, size = 0x400, scoped, tag = 'output window, operand 0']
    %12 = vsyncpa [#allocation4], 0
    %s13 = scalar_lea.sflag [#allocation4], 1
    %14 = vsyncpa %s13, 0
    %15 = vsyncpa [#allocation5], 0
    %s16 = scalar_lea.sflag [#allocation5], 1
    %17 = vsyncpa %s16, 0
    loop: start=0, step=1, limit=6
    $region2: #{tpu_custom_call.1} parent=1 // loop_pre_header
      _
    $region3: #{tpu_custom_call.1} parent=1 // loop_header
      %s19 = sphi 0, %s23
      %p20 = scmp.ge.s32.totalorder %s19, 6
      %s29 = sphi 0, %s31
      %s32 = sphi 0, %s29
      %s33 = sphi 0, %s32
      %s49 = sphi 0, %s33
      %s53 = sphi 0, %s53
      %s55 = sphi 0, %s53
      %s56 = sphi 0, %s55
      %s70 = sphi 0, %s56
      %s74 = sphi 0, %s74
      %s76 = sphi 0, %s74
      %s77 = sphi 0, %s76
      %s91 = sphi 0, %s77
      %s95 = sphi 0, %s95
      %s97 = sphi 0, %s95
      %s98 = sphi 0, %s97
      %s112 = sphi 0, %s98
      %s116 = sphi 0, %s116
      %s118 = sphi 0, %s116
      %s119 = sphi 0, %s118
      %s133 = sphi 0, %s119
      %s139 = sphi 0, %s141
      %s142 = sphi 0, %s139
      %s143 = sphi 0, %s142
      %s159 = sphi 0, %s143
    $region4: #{tpu_custom_call.1} parent=1 // loop_header_branch
      %22 = sbr.rel (%p20) target = $region8
    $region5: #{tpu_custom_call.1} parent=1 // loop_body
      %s24 = ssub.s32 %s19, 1
      %s25 = ssub.s32 %s19, 2
      %s26 = sadd.s32 %s19, 1
      %s27 = ssub.s32 %s19, %s26
      %p28 = scmp.eq.s32.totalorder %s27, 0
      %s30 = sadd.s32 %s29, 1
      %s31 = scalar_select %p28, %s29, %s30
      %p34 = pneg %p28
      %p35 = scmp.eq.s32.totalorder %s19, 3
      %p36 = por %p34, %p35
      %p37 = scmp.ne.s32.totalorder %s29, %s32
      %p38 = scmp.eq.s32.totalorder %s19, 0
      %p39 = por %p37, %p38
      %p40 = scmp.ne.s32.totalorder %s29, %s32
      %p41 = scmp.eq.s32.totalorder %s24, 3
      %p42 = por %p40, %p41
      %p43 = scmp.ne.s32.totalorder %s32, %s33
      %p44 = scmp.eq.s32.totalorder %s24, 0
      %p45 = por %p43, %p44
      %p46 = scmp.ne.s32.totalorder %s32, %s33
      %p47 = scmp.eq.s32.totalorder %s25, 3
      %p48 = por %p46, %p47
      %p50 = scmp.ne.s32.totalorder %s33, %s49
      %p51 = scmp.eq.s32.totalorder %s25, 0
      %p52 = por %p50, %p51
      %s54 = sadd.s32 %s53, 1
      %p57 = scmp.eq.s32.totalorder %s19, 3
      %p58 = scmp.ne.s32.totalorder %s53, %s55
      %p59 = scmp.eq.s32.totalorder %s19, 0
      %p60 = por %p58, %p59
      %p61 = scmp.ne.s32.totalorder %s53, %s55
      %p62 = scmp.eq.s32.totalorder %s24, 3
      %p63 = por %p61, %p62
      %p64 = scmp.ne.s32.totalorder %s55, %s56
      %p65 = scmp.eq.s32.totalorder %s24, 0
      %p66 = por %p64, %p65
      %p67 = scmp.ne.s32.totalorder %s55, %s56
      %p68 = scmp.eq.s32.totalorder %s25, 3
      %p69 = por %p67, %p68
      %p71 = scmp.ne.s32.totalorder %s56, %s70
      %p72 = scmp.eq.s32.totalorder %s25, 0
      %p73 = por %p71, %p72
      %s75 = sadd.s32 %s74, 1
      %p78 = scmp.eq.s32.totalorder %s19, 3
      %p79 = scmp.ne.s32.totalorder %s74, %s76
      %p80 = scmp.eq.s32.totalorder %s19, 0
      %p81 = por %p79, %p80
      %p82 = scmp.ne.s32.totalorder %s74, %s76
      %p83 = scmp.eq.s32.totalorder %s24, 3
      %p84 = por %p82, %p83
      %p85 = scmp.ne.s32.totalorder %s76, %s77
      %p86 = scmp.eq.s32.totalorder %s24, 0
      %p87 = por %p85, %p86
      %p88 = scmp.ne.s32.totalorder %s76, %s77
      %p89 = scmp.eq.s32.totalorder %s25, 3
      %p90 = por %p88, %p89
      %p92 = scmp.ne.s32.totalorder %s77, %s91
      %p93 = scmp.eq.s32.totalorder %s25, 0
      %p94 = por %p92, %p93
      %s96 = sadd.s32 %s95, 1
      %p99 = scmp.eq.s32.totalorder %s19, 3
      %p100 = scmp.ne.s32.totalorder %s95, %s97
      %p101 = scmp.eq.s32.totalorder %s19, 0
      %p102 = por %p100, %p101
      %p103 = scmp.ne.s32.totalorder %s95, %s97
      %p104 = scmp.eq.s32.totalorder %s24, 3
      %p105 = por %p103, %p104
      %p106 = scmp.ne.s32.totalorder %s97, %s98
      %p107 = scmp.eq.s32.totalorder %s24, 0
      %p108 = por %p106, %p107
      %p109 = scmp.ne.s32.totalorder %s97, %s98
      %p110 = scmp.eq.s32.totalorder %s25, 3
      %p111 = por %p109, %p110
      %p113 = scmp.ne.s32.totalorder %s98, %s112
      %p114 = scmp.eq.s32.totalorder %s25, 0
      %p115 = por %p113, %p114
      %s117 = sadd.s32 %s116, 1
      %p120 = scmp.eq.s32.totalorder %s19, 3
      %p121 = scmp.ne.s32.totalorder %s116, %s118
      %p122 = scmp.eq.s32.totalorder %s19, 0
      %p123 = por %p121, %p122
      %p124 = scmp.ne.s32.totalorder %s116, %s118
      %p125 = scmp.eq.s32.totalorder %s24, 3
      %p126 = por %p124, %p125
      %p127 = scmp.ne.s32.totalorder %s118, %s119
      %p128 = scmp.eq.s32.totalorder %s24, 0
      %p129 = por %p127, %p128
      %p130 = scmp.ne.s32.totalorder %s118, %s119
      %p131 = scmp.eq.s32.totalorder %s25, 3
      %p132 = por %p130, %p131
      %p134 = scmp.ne.s32.totalorder %s119, %s133
      %p135 = scmp.eq.s32.totalorder %s25, 0
      %p136 = por %p134, %p135
      %s137 = ssub.s32 %s19, %s26
      %p138 = scmp.eq.s32.totalorder %s137, 0
      %s140 = sadd.s32 %s139, 1
      %s141 = scalar_select %p138, %s139, %s140
      %p144 = pneg %p138
      %p145 = scmp.eq.s32.totalorder %s19, 3
      %p146 = por %p144, %p145
      %p147 = scmp.ne.s32.totalorder %s139, %s142
      %p148 = scmp.eq.s32.totalorder %s19, 0
      %p149 = por %p147, %p148
      %p150 = scmp.ne.s32.totalorder %s139, %s142
      %p151 = scmp.eq.s32.totalorder %s24, 3
      %p152 = por %p150, %p151
      %p153 = scmp.ne.s32.totalorder %s142, %s143
      %p154 = scmp.eq.s32.totalorder %s24, 0
      %p155 = por %p153, %p154
      %p156 = scmp.ne.s32.totalorder %s142, %s143
      %p157 = scmp.eq.s32.totalorder %s25, 3
      %p158 = por %p156, %p157
      %p160 = scmp.ne.s32.totalorder %s143, %s159
      %p161 = scmp.eq.s32.totalorder %s25, 0
      %p162 = por %p160, %p161
      %p163 = scmp.le.s32.totalorder 1, %s19
      %p164 = scmp.lt.s32.totalorder %s19, 5
      %p165 = pnand %p163, %p164
      %p166 = pneg %p165
      // Predicated region
      $region9: #{tpu_custom_call.1} parent=5 // pred_check
        _
      $region10: #{tpu_custom_call.1} parent=5 // pred_check_branch
        %168 = sbr.rel (%p165) target = $region12
      $region11: #{tpu_custom_call.1} parent=5 // pred_region
        %s169 = ssub.s32 %s19, 1
        // Predicated region
        $region13: #{tpu_custom_call.1} parent=11 // pred_check
          %p170 = pneg %p66
        $region14: #{tpu_custom_call.1} parent=11 // pred_check_branch
          %172 = sbr.rel (%p170) target = $region16
        $region15: #{tpu_custom_call.1} parent=11 // pred_region
          _
        $region16: #{tpu_custom_call.1} parent=11 // pred_fallthru
          _
        // Predicated region
        $region17: #{tpu_custom_call.1} parent=11 // pred_check
          %p173 = pneg %p87
        $region18: #{tpu_custom_call.1} parent=11 // pred_check_branch
          %175 = sbr.rel (%p173) target = $region20
        $region19: #{tpu_custom_call.1} parent=11 // pred_region
          _
        $region20: #{tpu_custom_call.1} parent=11 // pred_fallthru
          _
        // Predicated region
        $region21: #{tpu_custom_call.1} parent=11 // pred_check
          %p176 = pneg %p108
        $region22: #{tpu_custom_call.1} parent=11 // pred_check_branch
          %178 = sbr.rel (%p176) target = $region24
        $region23: #{tpu_custom_call.1} parent=11 // pred_region
          _
        $region24: #{tpu_custom_call.1} parent=11 // pred_fallthru
          _
        // Predicated region
        $region25: #{tpu_custom_call.1} parent=11 // pred_check
          %p179 = pneg %p129
        $region26: #{tpu_custom_call.1} parent=11 // pred_check_branch
          %181 = sbr.rel (%p179) target = $region28
        $region27: #{tpu_custom_call.1} parent=11 // pred_region
          _
        $region28: #{tpu_custom_call.1} parent=11 // pred_fallthru
          _
      $region12: #{tpu_custom_call.1} parent=5 // pred_fallthru
        _
      %p182 = scmp.lt.s32.totalorder %s19, 4
      // Predicated region
      $region29: #{tpu_custom_call.1} parent=5 // pred_check
        %p183 = pneg %p182
      $region30: #{tpu_custom_call.1} parent=5 // pred_check_branch
        %185 = sbr.rel (%p183) target = $region32
      $region31: #{tpu_custom_call.1} parent=5 // pred_region
        // Predicated region
        $region33: #{tpu_custom_call.1} parent=31 // pred_check
          %p186 = pneg %p39
        $region34: #{tpu_custom_call.1} parent=31 // pred_check_branch
          %188 = sbr.rel (%p186) target = $region36
        $region35: #{tpu_custom_call.1} parent=31 // pred_region
          %s189 = sand.u32 %s29, 1
          %s190 = scalar_lea.sflag [#allocation4], %s189
          %s191 = sand.u32 %s29, 1
          %s192 = smul.addr %s191, 32
          %s193 = scalar_lea.vmem [#allocation3], %s192
          %s195 = ssub.s32 512, 512
          %196 = vsyncadd %s190, %s195
          %s197 = smul.addr %s19, 4
          %s198 = smul.addr %s197, 128
          %s199 = scalar_lea.hbm %s0, %s198
          %s200 = sshll.u32 %s193, 4
          %s201 = int_to_ptr.vmem [resolvable:$true] %s200
          %206 = dma.hbm_to_vmem [thread:$0]  %s199, 512, %s201, %s190, 128, 128, 8
        $region36: #{tpu_custom_call.1} parent=31 // pred_fallthru
          _
      $region32: #{tpu_custom_call.1} parent=5 // pred_fallthru
        _
      %p207 = scmp.le.s32.totalorder 1, %s19
      %p208 = scmp.lt.s32.totalorder %s19, 5
      %p209 = pnand %p207, %p208
      %p210 = pneg %p209
      // Predicated region
      $region37: #{tpu_custom_call.1} parent=5 // pred_check
        _
      $region38: #{tpu_custom_call.1} parent=5 // pred_check_branch
        %212 = sbr.rel (%p209) target = $region40
      $region39: #{tpu_custom_call.1} parent=5 // pred_region
        %s213 = ssub.s32 %s19, 1
        %s214 = sand.u32 %s32, 1
        %s215 = scalar_lea.sflag [#allocation4], %s214
        %s216 = sand.u32 %s32, 1
        %s217 = smul.addr %s216, 32
        %s218 = scalar_lea.vmem [#allocation3], %s217
        // Predicated region
        $region41: #{tpu_custom_call.1} parent=39 // pred_check
          %p219 = pneg %p45
        $region42: #{tpu_custom_call.1} parent=39 // pred_check_branch
          %221 = sbr.rel (%p219) target = $region44
        $region43: #{tpu_custom_call.1} parent=39 // pred_region
          %222 = dma.done %s215, 512
        $region44: #{tpu_custom_call.1} parent=39 // pred_fallthru
          _
        %s223 = sand.u32 %s32, 1
        %s224 = scalar_lea.sflag [#allocation4], %s223
        %s225 = sand.u32 %s32, 1
        %s226 = smul.addr %s225, 32
        %s227 = scalar_lea.vmem [#allocation3], %s226
        %p228 = pneg %p45
        %p229 = pneg %p42
        %p230 = pneg %p66
        %p231 = pneg %p63
        %p232 = pneg %p87
        %p233 = pneg %p84
        %p234 = pneg %p108
        %p235 = pneg %p105
        %p236 = pneg %p129
        %p237 = pneg %p126
        %p238 = pneg %p155
        %p239 = pneg %p152
        %s240 = sand.u32 %s142, 1
        %s241 = scalar_lea.sflag [#allocation5], %s240
        %s242 = sand.u32 %s142, 1
        %s243 = scalar_lea.vmem [#allocation6], %s242
        %v244 = vld [vmem:[%s218] sm:$0xff]
        %v245 = vld [vmem:[%s218 + $0x8] sm:$0xff]
        %v246 = vld [vmem:[%s218 + $0x10] sm:$0xff]
        %v247 = vld [vmem:[%s218 + $0x18] sm:$0xff]
        %v248 = vld [vmem:[%s1] sm:$0xff]
        %v249 = vld [vmem:[%s1 + $0x8] sm:$0xff]
        %v250 = vld [vmem:[%s1 + $0x10] sm:$0xff]
        %v251 = vld [vmem:[%s1 + $0x18] sm:$0xff]
        %v252 = vld [vmem:[%s2] sm:$0xff]
        %v253 = vld [vmem:[%s2 + $0x8] sm:$0xff]
        %v254 = vld [vmem:[%s2 + $0x10] sm:$0xff]
        %v255 = vld [vmem:[%s2 + $0x18] sm:$0xff]
        %257 = vset.pattern.permute.xlu0 0
        %258 = vperm.xlu0 %257, %v252
        %v259 = vpop.permute.xlu0 %258
        %262 = vset.pattern.permute.xlu0 0
        %263 = vperm.xlu0 %262, %v253
        %v264 = vpop.permute.xlu0 %263
        %267 = vset.pattern.permute.xlu0 0
        %268 = vperm.xlu0 %267, %v254
        %v269 = vpop.permute.xlu0 %268
        %272 = vset.pattern.permute.xlu0 0
        %273 = vperm.xlu0 %272, %v255
        %v274 = vpop.permute.xlu0 %273
        %vm276 = vcmask 261120
        %v278 = vsel %vm276, %v248, 0
        %v281 = vsel %vm276, %v249, 0
        %v284 = vsel %vm276, %v250, 0
        %v287 = vsel %vm276, %v251, 0
        %289 = vmatprep.subr.mxu0 0.0
        %290 = vmatpush1.msra.mxu0 %v244
        %291 = vmatprep.subr.mxu0 0.0
        %292 = vmatpush1.msra.mxu0 %v245
        %293 = vmatprep.subr.mxu0 0.0
        %294 = vmatpush1.msra.mxu0 %v246
        %295 = vmatprep.subr.mxu0 0.0
        %296 = vmatpush1.msra.mxu0 %v247
        %297 = vmatprep.subr.mxu0 0.0
        %298 = vmatpush1.msra.mxu0 0.0
        %299 = vmatprep.subr.mxu0 0.0
        %300 = vmatpush1.msra.mxu0 0.0
        %301 = vmatprep.subr.mxu0 0.0
        %302 = vmatpush1.msra.mxu0 0.0
        %303 = vmatprep.subr.mxu0 0.0
        %304 = vmatpush1.msra.mxu0 0.0
        %305 = vmatprep.subr.mxu0 0.0
        %306 = vmatpush1.msra.mxu0 0.0
        %307 = vmatprep.subr.mxu0 0.0
        %308 = vmatpush1.msra.mxu0 0.0
        %309 = vmatprep.subr.mxu0 0.0
        %310 = vmatpush1.msra.mxu0 0.0
        %311 = vmatprep.subr.mxu0 0.0
        %312 = vmatpush1.msra.mxu0 0.0
        %313 = vmatprep.subr.mxu0 0.0
        %314 = vmatpush1.msra.mxu0 0.0
        %315 = vmatprep.subr.mxu0 0.0
        %316 = vmatpush1.msra.mxu0 0.0
        %317 = vmatprep.subr.mxu0 0.0
        %318 = vmatpush1.msra.mxu0 0.0
        %319 = vmatprep.subr.mxu0 0.0
        %320 = vmatpush1.msra.mxu0 0.0
        %321 = vmatprep.subr.mxu0 0.0
        %322 = vmatpush1.msra.mxu0 0.0
        %323 = vmatprep.subr.mxu0 0.0
        %324 = vmatpush1.msra.mxu0 0.0
        %325 = vmatprep.subr.mxu0 0.0
        %326 = vmatpush1.msra.mxu0 0.0
        %327 = vmatprep.subr.mxu0 0.0
        %328 = vmatpush1.msra.mxu0 0.0
        %329 = vmatprep.subr.mxu0 0.0
        %330 = vmatpush1.msra.mxu0 0.0
        %331 = vmatprep.subr.mxu0 0.0
        %332 = vmatpush1.msra.mxu0 0.0
        %333 = vmatprep.subr.mxu0 0.0
        %334 = vmatpush1.msra.mxu0 0.0
        %335 = vmatprep.subr.mxu0 0.0
        %336 = vmatpush1.msra.mxu0 0.0
        %337 = vmatprep.subr.mxu0 0.0
        %338 = vmatpush1.msra.mxu0 0.0
        %339 = vmatprep.subr.mxu0 0.0
        %340 = vmatpush1.msra.mxu0 0.0
        %341 = vmatprep.subr.mxu0 0.0
        %342 = vmatpush1.msra.mxu0 0.0
        %343 = vmatprep.subr.mxu0 0.0
        %344 = vmatpush1.msra.mxu0 0.0
        %345 = vmatprep.subr.mxu0 0.0
        %346 = vmatpush1.msra.mxu0 0.0
        %347 = vmatprep.subr.mxu0 0.0
        %348 = vmatpush1.msra.mxu0 0.0
        %349 = vmatprep.subr.mxu0 0.0
        %350 = vmatpush1.msra.mxu0 0.0
        %351 = vmatprep.subr.mxu0 0.0
        %352 = vmatpush1.msra.mxu0 0.0
        %353 = vmatprep.mubr.f32.mxu0 0.0
        %354 = vmatmul.mubr.f32.gmra.mrb[0].mxu0 %v278
        %v355 = vpop.f32.mrb[0].mxu0
        %v356 = vadd.f32 %v259, %v355
        %v357 = vpop.f32.mrb[0].mxu0
        %358 = vmatprep.mubr.f32.mxu0 0.0
        %359 = vmatmul.mubr.f32.gmra.mrb[0].mxu0 %v281
        %v360 = vpop.f32.mrb[0].mxu0
        %v361 = vadd.f32 %v264, %v360
        %v362 = vpop.f32.mrb[0].mxu0
        %363 = vmatprep.mubr.f32.mxu0 0.0
        %364 = vmatmul.mubr.f32.gmra.mrb[0].mxu0 %v284
        %v365 = vpop.f32.mrb[0].mxu0
        %v366 = vadd.f32 %v269, %v365
        %v367 = vpop.f32.mrb[0].mxu0
        %368 = vmatprep.mubr.f32.mxu0 0.0
        %369 = vmatmul.mubr.f32.gmra.mrb[0].mxu0 %v287
        %v370 = vpop.f32.mrb[0].mxu0
        %v371 = vadd.f32 %v274, %v370
        %v372 = vpop.f32.mrb[0].mxu0
        %373 = vdwg.mxu0
        %v374 = vtanh.pop %v356
        %v375 = vtanh.pop %v361
        %v376 = vxor.u32 %v366, 2147483648
        %v377 = vxor.u32 %v371, 2147483648
        %v378 = vmul.f32 %v376, 1.442695
        %v379 = vpow.pop %v378
        %v380 = vmul.f32 %v377, 1.442695
        %v381 = vpow.pop %v380
        %v382 = vadd.f32 %v379, 1.0
        %v383 = vadd.f32 %v381, 1.0
        %v384 = vrcp.pop %v382
        %v385 = vmul.f32 1.0, %v384
        %v386 = vrcp.pop %v383
        %v387 = vmul.f32 1.0, %v386
        %v388 = vmul.f32 %v374, %v385
        %v389 = vmul.f32 %v375, %v387
        %v390 = vld [vmem:[%s3] sm:$0xff]
        %v391 = vld [vmem:[%s3 + $0x8] sm:$0xff]
        %393 = vset.pattern.permute.xlu0 0
        %394 = vperm.xlu0 %393, %v390
        %v395 = vpop.permute.xlu0 %394
        %398 = vset.pattern.permute.xlu0 0
        %399 = vperm.xlu0 %398, %v391
        %v400 = vpop.permute.xlu0 %399
        %v402 = vmul.f32 %v388, %v395
        %v403 = vmul.f32 %v389, %v400
        %v404 = vadd.f32 %v402, %v403
        %v405 = vrot.slane %v404, 4
        %v406 = vadd.f32 %v404, %v405
        %v407 = vrot.slane %v406, 2
        %v408 = vadd.f32 %v406, %v407
        %v409 = vrot.slane %v408, 1
        %v410 = vadd.f32 %v408, %v409
        %v411 = vld [vmem:[#allocation2] sm:$0x1]
        %413 = vset.pattern.permute.xlu0 0
        %414 = vperm.xlu0 %413, %v411
        %v415 = vpop.permute.xlu0 %414
        %v417 = vlaneseq
        %v418 = vshrl.u32 %v417, 7
        %v419 = vsub.s32 0, %v418
        %v420 = vrot.slane %v415, %v419
        %v421 = vadd.f32 %v410, %v420
        %v422 = vlaneseq
        %v423 = vand.u32 %v422, 127
        %vm424 = vcmp.lt.s32.totalorder %v423, 8
        %v425 = vsel %vm424, %v421, -1e+30
        %426 = vmax.xlane.f32.xlu0 %v425
        %v427 = vpop.xlane.xlu0 %426
        %v428 = vsub.f32 %v425, %v427
        %v429 = vmul.f32 %v428, 1.442695
        %v430 = vpow.pop %v429
        %431 = vadd.xlane.f32.xlu0 %v430
        %v432 = vpop.xlane.xlu0 %431
        %v433 = vrcp.pop %v432
        %v434 = vmul.f32 %v430, %v433
        %435 = vst [vmem:[%s243] sm:$0x1] %v434
        %s436 = sand.u32 %s142, 1
        %s437 = scalar_lea.sflag [#allocation5], %s436
        %s438 = sand.u32 %s142, 1
        %s439 = scalar_lea.vmem [#allocation6], %s438
        // Predicated region
        $region45: #{tpu_custom_call.1} parent=39 // pred_check
          %p440 = pneg %p152
        $region46: #{tpu_custom_call.1} parent=39 // pred_check_branch
          %442 = sbr.rel (%p440) target = $region48
        $region47: #{tpu_custom_call.1} parent=39 // pred_region
          %s444 = ssub.s32 16, 16
          %445 = vsyncadd %s437, %s444
          %s446 = smul.addr %s24, 16
          %s447 = scalar_lea.hbm %s5, %s446
          %s449 = sshll.u32 %s439, 4
          %s450 = int_to_ptr.vmem [resolvable:$true] %s449
          %452 = dma.vmem_to_hbm [thread:$0]  %s450, 16, %s447, %s437
        $region48: #{tpu_custom_call.1} parent=39 // pred_fallthru
          _
      $region40: #{tpu_custom_call.1} parent=5 // pred_fallthru
        _
      %p453 = scmp.le.s32.totalorder 2, %s19
      // Predicated region
      $region49: #{tpu_custom_call.1} parent=5 // pred_check
        %p454 = pneg %p453
      $region50: #{tpu_custom_call.1} parent=5 // pred_check_branch
        %456 = sbr.rel (%p454) target = $region52
      $region51: #{tpu_custom_call.1} parent=5 // pred_region
        %s457 = ssub.s32 %s19, 2
        // Predicated region
        $region53: #{tpu_custom_call.1} parent=51 // pred_check
          %p458 = pneg %p158
        $region54: #{tpu_custom_call.1} parent=51 // pred_check_branch
          %460 = sbr.rel (%p458) target = $region56
        $region55: #{tpu_custom_call.1} parent=51 // pred_region
          %s461 = sand.u32 %s143, 1
          %s462 = scalar_lea.sflag [#allocation5], %s461
          %s463 = sand.u32 %s143, 1
          %s464 = scalar_lea.vmem [#allocation6], %s463
          %465 = dma.done %s462, 16
        $region56: #{tpu_custom_call.1} parent=51 // pred_fallthru
          _
      $region52: #{tpu_custom_call.1} parent=5 // pred_fallthru
        _
    $region6: #{tpu_custom_call.1} parent=1 // loop_footer
      %s23 = sadd.s32 1, %s19
    $region7: #{tpu_custom_call.1} parent=1 // loop_footer_branch
      %18 = sbr.rel target = $region3
    $region8: #{tpu_custom_call.1} parent=1 // loop_exit
      _
    %466 = vsyncpa [#allocation4], 1
    %s467 = scalar_lea.sflag [#allocation4], 1
    %468 = vsyncpa %s467, 1
    %469 = vsyncpa [#allocation5], 1
    %s470 = scalar_lea.sflag [#allocation5], 1
    %471 = vsyncpa %s470, 1

</llo_original>
